<compile_context>
chip_gen: v5e
topology: v5e:2x2
jax: 0.10.0
libtpu: 0.0.40
codegen_flags: <defaults>
</compile_context>

<pallas_src>
import functools

import jax
import jax.numpy as jnp
from jax.experimental import pallas as pl
from jax.experimental.pallas import tpu as pltpu

BN_EPS = 1e-5
LANE = 128
VMEM = pltpu.MemorySpace.VMEM


def _round_up(n, m):
    return ((n + m - 1) // m) * m


# ---------------------------------------------------------------------------
# Fused kernel: whole [B, F] batch fits comfortably in one VMEM block.
# ---------------------------------------------------------------------------
def fused_block_kernel(x_ref, w_ref, b_ref, gamma_ref, beta_ref, o_ref):
    # Linear on the MXU (native input dtype, f32 accumulation) + bias.
    h = jnp.dot(x_ref[...], w_ref[...], preferred_element_type=jnp.float32)
    h = jnp.maximum(h + b_ref[...], 0.0)                       # ReLU
    # BatchNorm1d training mode: biased variance over the batch axis.
    mean = jnp.mean(h, axis=0, keepdims=True)
    centered = h - mean
    var = jnp.mean(centered * centered, axis=0, keepdims=True)
    scale = jax.lax.rsqrt(var + BN_EPS) * gamma_ref[...]       # fold gamma in
    o_ref[...] = (centered * scale + beta_ref[...]).astype(o_ref.dtype)


# ---------------------------------------------------------------------------
# Tiled path, pass 1: h = relu(xW + b); accumulate per-feature sum / sumsq.
# ---------------------------------------------------------------------------
def linear_relu_stats_kernel(x_ref, w_ref, b_ref, h_ref, sum_ref, sq_ref,
                             *, tile_b, valid_rows):
    i = pl.program_id(0)

    @pl.when(i == 0)
    def _():
        sum_ref[...] = jnp.zeros_like(sum_ref)
        sq_ref[...] = jnp.zeros_like(sq_ref)

    h = jnp.dot(x_ref[...], w_ref[...], preferred_element_type=jnp.float32)
    h = jnp.maximum(h + b_ref[...], 0.0)
    h_ref[...] = h.astype(h_ref.dtype)

    # Mask rows beyond the true batch size (batch padded to a tile multiple)
    # so the global statistics stay exact.
    row = jax.lax.broadcasted_iota(jnp.int32, (tile_b, 1), 0) + i * tile_b
    hv = jnp.where(row < valid_rows, h, 0.0)
    sum_ref[...] += jnp.sum(hv, axis=0, keepdims=True)
    sq_ref[...] += jnp.sum(hv * hv, axis=0, keepdims=True)


# ---------------------------------------------------------------------------
# Tiled path, pass 2: y = h * scale + shift  (per-feature scale/shift).
# ---------------------------------------------------------------------------
def bn_apply_kernel(h_ref, scale_ref, shift_ref, o_ref):
    o_ref[...] = (h_ref[...] * scale_ref[...] + shift_ref[...]).astype(o_ref.dtype)


def block_forward(x, w, b, gamma, beta, *, tile_b=512, force_tiled=False):
    """Block forward pass.

    x:     [B, F_in]      activations
    w:     [F_out, F_in]  nn.Linear weight (PyTorch layout)
    b:     [F_out]        nn.Linear bias
    gamma: [F_out]        BatchNorm1d weight
    beta:  [F_out]        BatchNorm1d bias
    returns [B, F_out] float32
    """
    B, F_in = x.shape
    F_out = w.shape[0]
    Fp = _round_up(F_out, LANE)           # lane-dense padded feature width

    # Pre-transpose + zero-pad parameters to the lane-dense width (done once).
    w_t = jnp.zeros((F_in, Fp), x.dtype).at[:, :F_out].set(w.T.astype(x.dtype))
    b_p = jnp.zeros((1, Fp), jnp.float32).at[:, :F_out].set(b.astype(jnp.float32))
    g_p = jnp.zeros((1, Fp), jnp.float32).at[:, :F_out].set(gamma.astype(jnp.float32))
    be_p = jnp.zeros((1, Fp), jnp.float32).at[:, :F_out].set(beta.astype(jnp.float32))

    use_fused = (not force_tiled) and B <= max(tile_b, 8)

    if use_fused:
        full = lambda a: pl.BlockSpec(a.shape, lambda: (0,) * a.ndim,
                                      memory_space=VMEM)
        cost = pl.CostEstimate(
            flops=2 * B * F_in * Fp + 8 * B * Fp,
            transcendentals=Fp,
            bytes_accessed=4 * (B * F_in + F_in * Fp + 3 * Fp + B * Fp))
        y = pl.pallas_call(
            fused_block_kernel,
            out_shape=jax.ShapeDtypeStruct((B, Fp), jnp.float32),
            in_specs=[full(x), full(w_t), full(b_p), full(g_p), full(be_p)],
            out_specs=pl.BlockSpec((B, Fp), lambda: (0, 0), memory_space=VMEM),
            cost_estimate=cost,
        )(x, w_t, b_p, g_p, be_p)
        return y[:, :F_out]

    # --------- batch-tiled two-pass path (scales with B) -----------------
    n_tiles = pl.cdiv(B, tile_b)
    B_pad = n_tiles * tile_b
    if B_pad != B:
        x = jnp.pad(x, ((0, B_pad - B), (0, 0)))

    pass1 = functools.partial(linear_relu_stats_kernel,
                              tile_b=tile_b, valid_rows=B)
    h, fsum, fsq = pl.pallas_call(
        pass1,
        out_shape=(
            jax.ShapeDtypeStruct((B_pad, Fp), jnp.float32),
            jax.ShapeDtypeStruct((1, Fp), jnp.float32),
            jax.ShapeDtypeStruct((1, Fp), jnp.float32),
        ),
        grid=(n_tiles,),
        in_specs=[
            pl.BlockSpec((tile_b, F_in), lambda i: (i, 0), memory_space=VMEM),
            pl.BlockSpec((F_in, Fp), lambda i: (0, 0), memory_space=VMEM),
            pl.BlockSpec((1, Fp), lambda i: (0, 0), memory_space=VMEM),
        ],
        out_specs=(
            pl.BlockSpec((tile_b, Fp), lambda i: (i, 0), memory_space=VMEM),
            pl.BlockSpec((1, Fp), lambda i: (0, 0), memory_space=VMEM),   # resident
            pl.BlockSpec((1, Fp), lambda i: (0, 0), memory_space=VMEM),   # resident
        ),
        compiler_params=pltpu.CompilerParams(
            dimension_semantics=("arbitrary",)),    # accumulators -> sequential
        cost_estimate=pl.CostEstimate(
            flops=2 * B_pad * F_in * Fp + 6 * B_pad * Fp,
            transcendentals=0,
            bytes_accessed=4 * (B_pad * F_in + F_in * Fp + Fp + 2 * B_pad * Fp)),
    )(x, w_t, b_p)

    # Tiny per-feature reduction -> exact global batch statistics.
    mean = fsum / B
    var = jnp.maximum(fsq / B - mean * mean, 0.0)
    scale = g_p * jax.lax.rsqrt(var + BN_EPS)        # [1, Fp]
    shift = be_p - mean * scale                      # [1, Fp]

    y = pl.pallas_call(
        bn_apply_kernel,
        out_shape=jax.ShapeDtypeStruct((B_pad, Fp), jnp.float32),
        grid=(n_tiles,),
        in_specs=[
            pl.BlockSpec((tile_b, Fp), lambda i: (i, 0), memory_space=VMEM),
            pl.BlockSpec((1, Fp), lambda i: (0, 0), memory_space=VMEM),
            pl.BlockSpec((1, Fp), lambda i: (0, 0), memory_space=VMEM),
        ],
        out_specs=pl.BlockSpec((tile_b, Fp), lambda i: (i, 0), memory_space=VMEM),
        compiler_params=pltpu.CompilerParams(
            dimension_semantics=("parallel",)),      # megacore-friendly on v7x
        cost_estimate=pl.CostEstimate(
            flops=2 * B_pad * Fp,
            transcendentals=0,
            bytes_accessed=4 * (2 * B_pad * Fp + 2 * Fp)),
    )(h, scale, shift)

    return y[:B, :F_out]


def reference_forward(x, w, b, gamma, beta):
    h = jnp.maximum(x @ w.T + b[None, :], 0.0)
    mean = jnp.mean(h, axis=0, keepdims=True)
    var = jnp.mean((h - mean) ** 2, axis=0, keepdims=True)
    return (h - mean) * jax.lax.rsqrt(var + BN_EPS) * gamma[None, :] + beta[None, :]


if __name__ == "__main__":
    # Block(input_size=32, output_size=64, use_batch_norm=True)
    B, F_IN, F_OUT = 8, 32, 64

    key = jax.random.PRNGKey(0)
    kx, kw, kb = jax.random.split(key, 3)

    x = jax.random.normal(kx, (B, F_IN), dtype=jnp.float32)

    # Deterministic parameter init (PyTorch Linear-style uniform bounds).
    bound = 1.0 / (F_IN ** 0.5)
    w = jax.random.uniform(kw, (F_OUT, F_IN), minval=-bound, maxval=bound,
                           dtype=jnp.float32)          # nn.Linear weight [out, in]
    b = jax.random.uniform(kb, (F_OUT,), minval=-bound, maxval=bound,
                           dtype=jnp.float32)          # nn.Linear bias
    gamma = jnp.ones((F_OUT,), dtype=jnp.float32)      # BatchNorm1d.weight default
    beta = jnp.zeros((F_OUT,), dtype=jnp.float32)      # BatchNorm1d.bias default

    # Small-batch fused path (the shape implied by the module).
    y = block_forward(x, w, b, gamma, beta)
    jax.block_until_ready(y)
    y_ref = reference_forward(x, w, b, gamma, beta)
    assert y.shape == (B, F_OUT)
    assert jnp.allclose(y, y_ref, atol=1e-4, rtol=1e-4)

    # Exercise the batch-tiled two-pass path (non-divisible batch -> masking).
    B2 = 1000
    x2 = jax.random.normal(jax.random.PRNGKey(1), (B2, F_IN), dtype=jnp.float32)
    y2 = block_forward(x2, w, b, gamma, beta, tile_b=256, force_tiled=True)
    jax.block_until_ready(y2)
    y2_ref = reference_forward(x2, w, b, gamma, beta)
    assert y2.shape == (B2, F_OUT)
    assert jnp.allclose(y2, y2_ref, atol=1e-3, rtol=1e-3)

    print("KERNEL_OK")
</pallas_src>

<mosaic_0001>
module attributes {stable_mosaic.version = 11 : i64} {
  func.func @fused_block_kernel(%arg0: memref<8x32xf32, #tpu.memory_space<vmem>>, %arg1: memref<32x128xf32, #tpu.memory_space<vmem>>, %arg2: memref<1x128xf32, #tpu.memory_space<vmem>>, %arg3: memref<1x128xf32, #tpu.memory_space<vmem>>, %arg4: memref<1x128xf32, #tpu.memory_space<vmem>>, %arg5: memref<8x128xf32, #tpu.memory_space<vmem>>) attributes {dimension_semantics = [], scalar_prefetch = 0 : i64, scratch_operands = 0 : i64, tpu.core_type = #tpu.core_type<tc>} {
    %c0 = arith.constant 0 : index
    %c0_0 = arith.constant 0 : index
    %0 = vector.load %arg0[%c0, %c0_0] : memref<8x32xf32, #tpu.memory_space<vmem>>, vector<8x32xf32>
    %c0_1 = arith.constant 0 : index
    %c0_2 = arith.constant 0 : index
    %1 = vector.load %arg1[%c0_1, %c0_2] : memref<32x128xf32, #tpu.memory_space<vmem>>, vector<32x128xf32>
    %cst = arith.constant dense<0.000000e+00> : vector<8x128xf32>
    %2 = tpu.matmul %0, %1, %cst {dimension_numbers = #tpu.dot_dimension_numbers<[1], [0], [0], [1], [0, 0, 1, 1], [], []>} : vector<8x32xf32>, vector<32x128xf32>, vector<8x128xf32> -> vector<8x128xf32>
    %c0_3 = arith.constant 0 : index
    %c0_4 = arith.constant 0 : index
    %3 = vector.load %arg2[%c0_3, %c0_4] : memref<1x128xf32, #tpu.memory_space<vmem>>, vector<1x128xf32>
    %4 = vector.broadcast %3 : vector<1x128xf32> to vector<8x128xf32>
    %5 = arith.addf %2, %4 : vector<8x128xf32>
    %cst_5 = arith.constant 0.000000e+00 : f32
    %6 = vector.broadcast %cst_5 : f32 to vector<8x128xf32>
    %7 = arith.maximumf %5, %6 : vector<8x128xf32>
    %cst_6 = arith.constant dense<0.000000e+00> : vector<128xf32>
    %8 = vector.multi_reduction <add>, %7, %cst_6 [0] : vector<8x128xf32> to vector<128xf32>
    %9 = vector.shape_cast %8 : vector<128xf32> to vector<1x128xf32>
    %cst_7 = arith.constant 8.000000e+00 : f32
    %10 = vector.broadcast %cst_7 : f32 to vector<1x128xf32>
    %11 = arith.divf %9, %10 : vector<1x128xf32>
    %12 = vector.broadcast %11 : vector<1x128xf32> to vector<8x128xf32>
    %13 = arith.subf %7, %12 : vector<8x128xf32>
    %14 = arith.mulf %13, %13 : vector<8x128xf32>
    %cst_8 = arith.constant dense<0.000000e+00> : vector<128xf32>
    %15 = vector.multi_reduction <add>, %14, %cst_8 [0] : vector<8x128xf32> to vector<128xf32>
    %16 = vector.shape_cast %15 : vector<128xf32> to vector<1x128xf32>
    %cst_9 = arith.constant 8.000000e+00 : f32
    %17 = vector.broadcast %cst_9 : f32 to vector<1x128xf32>
    %18 = arith.divf %16, %17 : vector<1x128xf32>
    %cst_10 = arith.constant 9.99999974E-6 : f32
    %19 = vector.broadcast %cst_10 : f32 to vector<1x128xf32>
    %20 = arith.addf %18, %19 : vector<1x128xf32>
    %21 = math.rsqrt %20 : vector<1x128xf32>
    %c0_11 = arith.constant 0 : index
    %c0_12 = arith.constant 0 : index
    %22 = vector.load %arg3[%c0_11, %c0_12] : memref<1x128xf32, #tpu.memory_space<vmem>>, vector<1x128xf32>
    %23 = arith.mulf %21, %22 : vector<1x128xf32>
    %24 = vector.broadcast %23 : vector<1x128xf32> to vector<8x128xf32>
    %25 = arith.mulf %13, %24 : vector<8x128xf32>
    %c0_13 = arith.constant 0 : index
    %c0_14 = arith.constant 0 : index
    %26 = vector.load %arg4[%c0_13, %c0_14] : memref<1x128xf32, #tpu.memory_space<vmem>>, vector<1x128xf32>
    %27 = vector.broadcast %26 : vector<1x128xf32> to vector<8x128xf32>
    %28 = arith.addf %25, %27 : vector<8x128xf32>
    %c0_15 = arith.constant 0 : index
    %c0_16 = arith.constant 0 : index
    %29 = vector.load %arg5[%c0_15, %c0_16] : memref<8x128xf32, #tpu.memory_space<vmem>>, vector<8x128xf32>
    tpu.vector_store %arg5[%c0_15, %c0_16], %28 {strides = array<i32>} : memref<8x128xf32, #tpu.memory_space<vmem>>, vector<8x128xf32>,
    return
  }
}

</mosaic_0001>

<llo_original>
// kernel: tpu_custom_call.1
$region0: #{tpu_custom_call.1}
  #allocation0 [shape = 'u32[]', space=smem, size = 0x4, offset = 0x4, fixed_abs, tag = 'smem constant byte address 0x4 - core index']
  #allocation1 [shape = 'u32[72,128]{1,0:T(1,128)}', space=vmem, size = 0x9000, scoped, tag = 'internal scratch']
  %s0 = inlined_call_operand.hbm [shape: f32[8,32], index: 0, kind: input, shape index: {}]
  %s1 = inlined_call_operand.hbm [shape: f32[32,128], index: 1, kind: input, shape index: {}]
  %s2 = inlined_call_operand.vmem [shape: f32[1,128], index: 2, kind: input, shape index: {}]
  %s3 = inlined_call_operand.vmem [shape: f32[1,128], index: 3, kind: input, shape index: {}]
  %s4 = inlined_call_operand.vmem [shape: f32[1,128], index: 4, kind: input, shape index: {}]
  %s5 = inlined_call_operand.hbm [shape: f32[8,128], index: 5, kind: output, shape index: {}]
  %s6 = sld [smem:[#allocation0]]
  $region38: #{tpu_custom_call.1} parent=0
    _
  %s8 = ssub.s32 1, %s6
  %s9 = scalar_select 0, %s8, %s6
  $region1: #{tpu_custom_call.1} parent=0
    #allocation2 [shape = 'u8[4096]{0}', space=vmem, size = 0x1000, scoped, tag = 'input window, operand 0, single buffered']
    #allocation3 [shape = 's32[1]{0}', space=sflag, size = 0x4, scoped, tag = 'scoped memory for tpu_custom_call.1']
    #allocation4 [shape = 's32[1]{0}', space=sflag, size = 0x4, scoped, tag = 'scoped memory for tpu_custom_call.1']
    #allocation5 [shape = 'u8[16384]{0}', space=vmem, size = 0x4000, scoped, tag = 'input window, operand 1, single buffered']
    #allocation6 [shape = 's32[1]{0}', space=sflag, size = 0x4, scoped, tag = 'scoped memory for tpu_custom_call.1']
    #allocation7 [shape = 'u8[4096]{0}', space=vmem, size = 0x1000, scoped, tag = 'output window, operand 0, single buffered']
    %10 = vsyncpa [#allocation3], 0
    %11 = vsyncpa [#allocation6], 0
    %12 = vsyncpa [#allocation4], 0
    // Predicated region
    $region2: #{tpu_custom_call.1} parent=1 // pred_check
      _
    $region3: #{tpu_custom_call.1} parent=1 // pred_check_branch
      %14 = sbr.rel (0) target = $region5
    $region4: #{tpu_custom_call.1} parent=1 // pred_region
      %16 = vsyncadd [#allocation3], 0
      %s18 = sshll.u32 %s0, 4
      %s19 = int_to_ptr.hbm [resolvable:$true] %s18
      %s20 = sshll.u32 [#allocation2], 4
      %s21 = int_to_ptr.vmem [resolvable:$true] %s20
      %23 = dma.hbm_to_vmem [thread:$0]  %s19, 128, %s21, [#allocation3]
    $region5: #{tpu_custom_call.1} parent=1 // pred_fallthru
      _
    // Predicated region
    $region6: #{tpu_custom_call.1} parent=1 // pred_check
      _
    $region7: #{tpu_custom_call.1} parent=1 // pred_check_branch
      %25 = sbr.rel (0) target = $region9
    $region8: #{tpu_custom_call.1} parent=1 // pred_region
      %27 = vsyncadd [#allocation6], 0
      %s28 = sshll.u32 %s1, 4
      %s29 = int_to_ptr.hbm [resolvable:$true] %s28
      %s30 = sshll.u32 [#allocation5], 4
      %s31 = int_to_ptr.vmem [resolvable:$true] %s30
      %36 = dma.hbm_to_vmem [thread:$0]  %s29, 512, %s31, [#allocation6], 128, 128, 8
    $region9: #{tpu_custom_call.1} parent=1 // pred_fallthru
      _
    // Predicated region
    $region10: #{tpu_custom_call.1} parent=1 // pred_check
      _
    $region11: #{tpu_custom_call.1} parent=1 // pred_check_branch
      %38 = sbr.rel (0) target = $region13
    $region12: #{tpu_custom_call.1} parent=1 // pred_region
      _
    $region13: #{tpu_custom_call.1} parent=1 // pred_fallthru
      _
    // Predicated region
    $region14: #{tpu_custom_call.1} parent=1 // pred_check
      _
    $region15: #{tpu_custom_call.1} parent=1 // pred_check_branch
      %40 = sbr.rel (0) target = $region17
    $region16: #{tpu_custom_call.1} parent=1 // pred_region
      _
    $region17: #{tpu_custom_call.1} parent=1 // pred_fallthru
      _
    // Predicated region
    $region18: #{tpu_custom_call.1} parent=1 // pred_check
      _
    $region19: #{tpu_custom_call.1} parent=1 // pred_check_branch
      %42 = sbr.rel (0) target = $region21
    $region20: #{tpu_custom_call.1} parent=1 // pred_region
      _
    $region21: #{tpu_custom_call.1} parent=1 // pred_fallthru
      _
    // Predicated region
    $region22: #{tpu_custom_call.1} parent=1 // pred_check
      _
    $region23: #{tpu_custom_call.1} parent=1 // pred_check_branch
      %44 = sbr.rel (0) target = $region25
    $region24: #{tpu_custom_call.1} parent=1 // pred_region
      %46 = dma.done [#allocation3], 128
    $region25: #{tpu_custom_call.1} parent=1 // pred_fallthru
      _
    // Predicated region
    $region26: #{tpu_custom_call.1} parent=1 // pred_check
      _
    $region27: #{tpu_custom_call.1} parent=1 // pred_check_branch
      %48 = sbr.rel (0) target = $region29
    $region28: #{tpu_custom_call.1} parent=1 // pred_region
      %50 = dma.done [#allocation6], 512
    $region29: #{tpu_custom_call.1} parent=1 // pred_fallthru
      _
    %v51 = vld [vmem:[#allocation2] sm:$0xff]
    %v52 = vld [vmem:[#allocation5] sm:$0xff]
    %v53 = vld [vmem:[#allocation5 + $0x8] sm:$0xff]
    %v54 = vld [vmem:[#allocation5 + $0x10] sm:$0xff]
    %v55 = vld [vmem:[#allocation5 + $0x18] sm:$0xff]
    %v56 = vld [vmem:[%s2] sm:$0x1]
    %v58 = vperm.slane %v56, 0
    %vm60 = vcmask 261120
    %v62 = vsel %vm60, %v51, 0
    %64 = vmatpush.msra.mxu0 0.0
    %65 = vmatpush.msra.mxu0 0.0
    %66 = vmatpush.msra.mxu0 0.0
    %67 = vmatpush.msra.mxu0 0.0
    %68 = vmatpush.msra.mxu0 0.0
    %69 = vmatpush.msra.mxu0 0.0
    %70 = vmatpush.msra.mxu0 0.0
    %71 = vmatpush.msra.mxu0 0.0
    %72 = vmatpush.msra.mxu0 0.0
    %73 = vmatpush.msra.mxu0 0.0
    %74 = vmatpush.msra.mxu0 0.0
    %75 = vmatpush.msra.mxu0 0.0
    %76 = vmatpush.msra.mxu0 %v55
    %77 = vmatpush.msra.mxu0 %v54
    %78 = vmatpush.msra.mxu0 %v53
    %79 = vmatpush.msra.mxu0 %v52
    %80 = vmatmul.f32.gmra.mxu0 %v62
    %v81 = vpop.f32.mrf.mxu0
    %v82 = vadd.f32 %v58, %v81
    %83 = vdwg.mxu0
    %v84 = vmax.f32 %v82, 0.0
    %v85 = vrot.slane %v84, 4
    %v86 = vadd.f32 %v84, %v85
    %v87 = vrot.slane %v86, 2
    %v88 = vadd.f32 %v86, %v87
    %v89 = vrot.slane %v88, 1
    %v90 = vadd.f32 %v88, %v89
    %v91 = vrcp.pop 8.0
    %v92 = vmul.f32 8.0, %v91
    %v93 = vsub.f32 1.0, %v92
    %v94 = vmul.f32 %v91, %v93
    %v95 = vadd.f32 %v91, %v94
    %vm96 = vweird.f32 %v91
    %v97 = vsel %vm96, %v91, %v95
    %v98 = vmul.f32 %v90, %v97
    %v99 = vsub.f32 %v84, %v98
    %v100 = vmul.f32 %v99, %v99
    %v101 = vrot.slane %v100, 4
    %v102 = vadd.f32 %v100, %v101
    %v103 = vrot.slane %v102, 2
    %v104 = vadd.f32 %v102, %v103
    %v105 = vrot.slane %v104, 1
    %v106 = vadd.f32 %v104, %v105
    %v107 = vmul.f32 %v106, %v97
    %v108 = vadd.f32 %v107, 1e-05
    %v109 = vrsqrt.pop %v108
    %v110 = vmul.f32 %v109, %v108
    %v111 = vmul.f32 %v110, %v109
    %v112 = vmul.f32 0.5, %v111
    %v113 = vsub.f32 1.5, %v112
    %v114 = vmul.f32 %v109, %v113
    %vm115 = vweird.f32 %v108
    %vm116 = vweird.f32 %v109
    %vm117 = vmor %vm115, %vm116
    %v118 = vsel %vm117, %v109, %v114
    %v119 = vld [vmem:[%s3] sm:$0x1]
    %v120 = vmul.f32 %v118, %v119
    %v121 = vperm.slane %v120, 0
    %v122 = vmul.f32 %v99, %v121
    %v123 = vld [vmem:[%s4] sm:$0x1]
    %v125 = vperm.slane %v123, 0
    %v127 = vadd.f32 %v122, %v125
    %128 = vst [vmem:[#allocation7] sm:$0xff] %v127
    // Predicated region
    $region30: #{tpu_custom_call.1} parent=1 // pred_check
      _
    $region31: #{tpu_custom_call.1} parent=1 // pred_check_branch
      %130 = sbr.rel (0) target = $region33
    $region32: #{tpu_custom_call.1} parent=1 // pred_region
      %132 = vsyncadd [#allocation4], 0
      %s134 = sshll.u32 [#allocation7], 4
      %s135 = int_to_ptr.vmem [resolvable:$true] %s134
      %s136 = sshll.u32 %s5, 4
      %s137 = int_to_ptr.hbm [resolvable:$true] %s136
      %139 = dma.vmem_to_hbm [thread:$0]  %s135, 128, %s137, [#allocation4]
    $region33: #{tpu_custom_call.1} parent=1 // pred_fallthru
      _
    // Predicated region
    $region34: #{tpu_custom_call.1} parent=1 // pred_check
      _
    $region35: #{tpu_custom_call.1} parent=1 // pred_check_branch
      %141 = sbr.rel (0) target = $region37
    $region36: #{tpu_custom_call.1} parent=1 // pred_region
      %143 = dma.done [#allocation4], 128
    $region37: #{tpu_custom_call.1} parent=1 // pred_fallthru
      _
    %144 = vsyncpa [#allocation3], 1
    %145 = vsyncpa [#allocation6], 1
    %146 = vsyncpa [#allocation4], 1

</llo_original>
